<compile_context>
chip_gen: v7x
topology: tpu7x:2x2x1
jax: 0.10.0
libtpu: 0.0.40
codegen_flags: <defaults>
</compile_context>

<pallas_src>
import jax
import jax.numpy as jnp
from jax.experimental import pallas as pl
from jax.experimental.pallas import tpu as pltpu

# Module-structural constants (MLP_Encoder / LSTM_Encoder in the reference).
H1 = 64          # real hidden width (MLP layer 1 / LSTM rnn1)
H1P = 128        # padded to a full lane group
H2 = 512         # embedding dim / rnn2 hidden
EMB = 512
_LN_EPS = 1e-5   # PyTorch nn.LayerNorm default


# ----------------------------------------------------------------------------
# shared in-kernel helpers
# ----------------------------------------------------------------------------
def _layernorm(x, gamma, beta, n):
    """LayerNorm over the first `n` lanes of the last axis.

    Requires lanes >= n of `x` to be exactly zero (guaranteed by the zero
    padding of the weights/biases feeding it) and gamma/beta zero-padded, so
    padded output lanes are exactly zero as well.  For n == x.shape[-1] this
    is the ordinary LayerNorm.
    """
    npad = x.shape[-1] - n
    mean = jnp.sum(x, axis=-1, keepdims=True) * (1.0 / n)
    d = x - mean
    ss = jnp.sum(d * d, axis=-1, keepdims=True)
    if npad:
        ss = ss - npad * mean * mean      # padded lanes contributed mean^2 each
    var = ss * (1.0 / n)
    return d * jax.lax.rsqrt(var + _LN_EPS) * gamma + beta


def _gates(g, hdim):
    """PyTorch LSTM gate order i, f, g, o; slices are 128-lane aligned."""
    i = jax.nn.sigmoid(g[:, 0 * hdim:1 * hdim])
    f = jax.nn.sigmoid(g[:, 1 * hdim:2 * hdim])
    c = jnp.tanh(g[:, 2 * hdim:3 * hdim])
    o = jax.nn.sigmoid(g[:, 3 * hdim:4 * hdim])
    return i, f, c, o


# ----------------------------------------------------------------------------
# Pallas kernels
# ----------------------------------------------------------------------------
def mlp_medcsp_kernel(x_ref, w1_ref, b1_ref, g1_ref, be1_ref,
                      w2_ref, b2_ref, g2_ref, be2_ref,
                      gn_ref, bn_ref, out_ref):
    """MLP_Encoder + MedCSP head for one batch tile (hidden padded 64->128)."""
    x = x_ref[...].astype(jnp.bfloat16)
    # encoder_hidden_layer -> ReLU -> LayerNorm(64)  (padded lanes stay 0)
    h = jnp.dot(x, w1_ref[...], preferred_element_type=jnp.float32) + b1_ref[...]
    h = jnp.maximum(h, 0.0)
    h = _layernorm(h, g1_ref[...], be1_ref[...], H1)
    # encoder_output_layer -> LayerNorm(512)
    y = jnp.dot(h.astype(jnp.bfloat16), w2_ref[...],
                preferred_element_type=jnp.float32) + b2_ref[...]
    y = _layernorm(y, g2_ref[...], be2_ref[...], EMB)
    # MedCSP: ReLU -> norm1 (Dropout = identity in eval mode)
    z = jnp.maximum(y, 0.0)
    out_ref[...] = _layernorm(z, gn_ref[...], bn_ref[...], EMB)


def lstm_medcsp_kernel(x_ref, wih1_ref, whh1_ref, b1_ref, lng_ref, lnb_ref,
                       wih2_ref, whh2_ref, b2_ref, gn_ref, bn_ref, out_ref,
                       gx1_ref, a_ref, gx2_ref):
    """LSTM_Encoder (cell-state branch) + MedCSP head for one batch tile.

    x_ref is time-major (T, bm, F) so per-step slices are leading-axis tiles.
    Both layers' input projections are hoisted out of the recurrences; only
    the recurrent h @ Whh matmuls remain inside the (small, unrolled) loops.
    """
    T, bm, F = x_ref.shape

    # Hoist all weight / affine reads out of the unrolled time loops.
    whh1 = whh1_ref[...]
    lng = lng_ref[...]
    lnb = lnb_ref[...]
    whh2 = whh2_ref[...]

    # Phase 0: layer-1 input projection for all timesteps (one big matmul),
    # staged in VMEM scratch so the loop reads one timestep at a time.
    x_flat = x_ref[...].reshape(T * bm, F).astype(jnp.bfloat16)
    gx1 = jnp.dot(x_flat, wih1_ref[...],
                  preferred_element_type=jnp.float32) + b1_ref[...]
    gx1_ref[...] = gx1.reshape(T, bm, 4 * H1P)

    # Phase 1: layer-1 recurrence; a_t = LN(relu(h1_t)) written to scratch.
    # T is small and static -> fully unrolled loop.
    h1 = jnp.zeros((bm, H1P), jnp.float32)
    c1 = jnp.zeros((bm, H1P), jnp.float32)
    for t in range(T):
        g1 = gx1_ref[t] + jnp.dot(h1.astype(jnp.bfloat16), whh1,
                                  preferred_element_type=jnp.float32)
        i1, f1, gg1, o1 = _gates(g1, H1P)
        c1 = f1 * c1 + i1 * gg1
        h1 = o1 * jnp.tanh(c1)
        # torch.relu(rnn1 output) -> LayerNorm(64), per timestep.
        a_ref[t] = _layernorm(jnp.maximum(h1, 0.0), lng, lnb, H1)

    # Phase 2: layer-2 input projection for all timesteps (one big matmul).
    a_flat = a_ref[...].reshape(T * bm, H1P).astype(jnp.bfloat16)
    gx2 = jnp.dot(a_flat, wih2_ref[...],
                  preferred_element_type=jnp.float32) + b2_ref[...]
    gx2_ref[...] = gx2.reshape(T, bm, 4 * H2)

    # Phase 3: layer-2 recurrence (only h2 @ Whh2 inside the loop).
    h2 = jnp.zeros((bm, H2), jnp.float32)
    c2 = jnp.zeros((bm, H2), jnp.float32)
    for t in range(T):
        g2 = gx2_ref[t] + jnp.dot(h2.astype(jnp.bfloat16), whh2,
                                  preferred_element_type=jnp.float32)
        i2, f2, gg2, o2 = _gates(g2, H2)
        c2 = f2 * c2 + i2 * gg2
        h2 = o2 * jnp.tanh(c2)

    # MedCSP uses the final cell state of rnn2: ReLU -> norm1 (dropout = id).
    z = jnp.maximum(c2, 0.0)
    out_ref[...] = _layernorm(z, gn_ref[...], bn_ref[...], H2)


# ----------------------------------------------------------------------------
# wrappers (pallas_call plumbing: batch grid, resident weights)
# ----------------------------------------------------------------------------
def _round_up(x, m):
    return ((x + m - 1) // m) * m


def _batch_tile(batch, cap=128):
    bm = min(cap, _round_up(max(batch, 1), 8))
    return bm, _round_up(batch, bm)


def _resident_spec(arr):
    nd = arr.ndim
    return pl.BlockSpec(arr.shape, lambda i, _nd=nd: (0,) * _nd)


def mlp_medcsp_forward(x, p):
    B, din = x.shape
    bm, Bp = _batch_tile(B)
    if Bp != B:
        x = jnp.pad(x, ((0, Bp - B), (0, 0)))
    args = (x, p["w1"], p["b1"], p["g1"], p["be1"],
            p["w2"], p["b2"], p["g2"], p["be2"], p["gn"], p["bn"])
    in_specs = [pl.BlockSpec((bm, din), lambda i: (i, 0))] + \
               [_resident_spec(a) for a in args[1:]]
    out = pl.pallas_call(
        mlp_medcsp_kernel,
        out_shape=jax.ShapeDtypeStruct((Bp, EMB), jnp.float32),
        grid=(Bp // bm,),
        in_specs=in_specs,
        out_specs=pl.BlockSpec((bm, EMB), lambda i: (i, 0)),
        compiler_params=pltpu.CompilerParams(
            dimension_semantics=("parallel",)),
    )(*args)
    return out[:B]


def lstm_medcsp_forward(x, p):
    B, T, F = x.shape
    # Cap bm so staged per-timestep scratch (gx1 + a + gx2) stays well inside
    # VMEM even on v7x (64 MiB physical per TensorCore).
    bm, Bp = _batch_tile(B, cap=128)
    if Bp != B:
        x = jnp.pad(x, ((0, Bp - B), (0, 0), (0, 0)))
    xt = jnp.transpose(x, (1, 0, 2))      # time-major: (T, Bp, F)
    args = (xt, p["wih1"], p["whh1"], p["b1"], p["lng"], p["lnb"],
            p["wih2"], p["whh2"], p["b2"], p["gn"], p["bn"])
    in_specs = [pl.BlockSpec((T, bm, F), lambda i: (0, i, 0))] + \
               [_resident_spec(a) for a in args[1:]]
    out = pl.pallas_call(
        lstm_medcsp_kernel,
        out_shape=jax.ShapeDtypeStruct((Bp, H2), jnp.float32),
        grid=(Bp // bm,),
        in_specs=in_specs,
        out_specs=pl.BlockSpec((bm, H2), lambda i: (i, 0)),
        scratch_shapes=[
            pltpu.VMEM((T, bm, 4 * H1P), jnp.float32),   # gx1 (layer-1 input proj)
            pltpu.VMEM((T, bm, H1P), jnp.float32),       # a_t = LN(relu(h1_t))
            pltpu.VMEM((T, bm, 4 * H2), jnp.float32),    # gx2 (layer-2 input proj)
        ],
        compiler_params=pltpu.CompilerParams(
            dimension_semantics=("parallel",),
            vmem_limit_bytes=64 * 1024 * 1024),
    )(*args)
    return out[:B]


def medcsp_forward(params, x, modality):
    if modality == "time_series":
        return lstm_medcsp_forward(x, params["lstm"])
    elif modality in ("demo", "icd", "drug"):
        return mlp_medcsp_forward(x, params[modality])
    else:
        # TODO(synk): image/text require pretrained BiomedCLIP; not translated.
        raise NotImplementedError(f"modality {modality!r} not supported")


# ----------------------------------------------------------------------------
# parameter init (natural PyTorch-equivalent shapes) + packing (pad/fuse/bf16)
# ----------------------------------------------------------------------------
def init_mlp_params(key, din, std=0.05):
    k1, k2, k3, k4 = jax.random.split(key, 4)
    return dict(
        w1=jax.random.normal(k1, (din, H1), jnp.float32) * std,   # Linear(din,64).T
        b1=jax.random.normal(k2, (H1,), jnp.float32) * std,
        g1=jnp.ones((H1,), jnp.float32), be1=jnp.zeros((H1,), jnp.float32),
        w2=jax.random.normal(k3, (H1, EMB), jnp.float32) * std,   # Linear(64,512).T
        b2=jax.random.normal(k4, (EMB,), jnp.float32) * std,
        g2=jnp.ones((EMB,), jnp.float32), be2=jnp.zeros((EMB,), jnp.float32),
        gn=jnp.ones((EMB,), jnp.float32), bn=jnp.zeros((EMB,), jnp.float32),
    )


def init_lstm_params(key, nfeat, std=0.05):
    ks = jax.random.split(key, 6)
    return dict(
        wih1=jax.random.normal(ks[0], (nfeat, 4 * H1), jnp.float32) * std,
        whh1=jax.random.normal(ks[1], (H1, 4 * H1), jnp.float32) * std,
        b1=jax.random.normal(ks[2], (4 * H1,), jnp.float32) * std,   # b_ih + b_hh folded
        lng=jnp.ones((H1,), jnp.float32), lnb=jnp.zeros((H1,), jnp.float32),
        wih2=jax.random.normal(ks[3], (H1, 4 * H2), jnp.float32) * std,
        whh2=jax.random.normal(ks[4], (H2, 4 * H2), jnp.float32) * std,
        b2=jax.random.normal(ks[5], (4 * H2,), jnp.float32) * std,   # b_ih + b_hh folded
        gn=jnp.ones((H2,), jnp.float32), bn=jnp.zeros((H2,), jnp.float32),
    )


def _pad_gate_cols(w, h_real, h_pad):
    """(rows, 4*h_real) -> (rows, 4*h_pad); gate k (PyTorch order i,f,g,o)
    occupies columns [k*h_pad, k*h_pad + h_real), the rest is zero."""
    rows = w.shape[0]
    out = jnp.zeros((rows, 4 * h_pad), jnp.float32)
    for k in range(4):
        out = out.at[:, k * h_pad:k * h_pad + h_real].set(
            w[:, k * h_real:(k + 1) * h_real])
    return out


def pack_mlp_params(p):
    din = p["w1"].shape[0]

    def padvec(v):
        return jnp.zeros((1, H1P), jnp.float32).at[0, :H1].set(v)

    w1 = jnp.zeros((din, H1P), jnp.float32).at[:, :H1].set(p["w1"])
    w2 = jnp.zeros((H1P, EMB), jnp.float32).at[:H1, :].set(p["w2"])
    return dict(
        w1=w1.astype(jnp.bfloat16),
        b1=padvec(p["b1"]), g1=padvec(p["g1"]), be1=padvec(p["be1"]),
        w2=w2.astype(jnp.bfloat16),
        b2=p["b2"].reshape(1, EMB),
        g2=p["g2"].reshape(1, EMB), be2=p["be2"].reshape(1, EMB),
        gn=p["gn"].reshape(1, EMB), bn=p["bn"].reshape(1, EMB),
    )


def pack_lstm_params(p):
    def padvec(v):
        return jnp.zeros((1, H1P), jnp.float32).at[0, :H1].set(v)

    wih1 = _pad_gate_cols(p["wih1"], H1, H1P)                       # (F, 4*H1P)
    whh1 = jnp.zeros((H1P, 4 * H1P), jnp.float32).at[:H1, :].set(
        _pad_gate_cols(p["whh1"], H1, H1P))                         # (H1P, 4*H1P)
    b1 = _pad_gate_cols(p["b1"].reshape(1, 4 * H1), H1, H1P)        # (1, 4*H1P)
    wih2 = jnp.zeros((H1P, 4 * H2), jnp.float32).at[:H1, :].set(p["wih2"])
    return dict(
        wih1=wih1.astype(jnp.bfloat16),
        whh1=whh1.astype(jnp.bfloat16),
        b1=b1,
        lng=padvec(p["lng"]), lnb=padvec(p["lnb"]),
        wih2=wih2.astype(jnp.bfloat16),                             # (H1P, 4*H2)
        whh2=p["whh2"].astype(jnp.bfloat16),                        # (H2, 4*H2)
        b2=p["b2"].reshape(1, 4 * H2),
        gn=p["gn"].reshape(1, H2), bn=p["bn"].reshape(1, H2),
    )


# ----------------------------------------------------------------------------
# main
# ----------------------------------------------------------------------------
if __name__ == "__main__":
    # Small, module-consistent shapes (real dims: icd=7686, demo=73, drug=1701,
    # lstm n_features=1318; embedding_dim=512 and hidden=64 kept structural).
    BZ = 2
    ICD_DIM, DEMO_DIM, DRUG_DIM = 128, 73, 96
    TS_FEAT, TS_LEN = 16, 8

    root = jax.random.PRNGKey(0)
    k_p, k_x = jax.random.split(root)
    kp = jax.random.split(k_p, 4)
    kx = jax.random.split(k_x, 4)

    params = {
        "icd": pack_mlp_params(init_mlp_params(kp[0], ICD_DIM)),
        "demo": pack_mlp_params(init_mlp_params(kp[1], DEMO_DIM)),
        "drug": pack_mlp_params(init_mlp_params(kp[2], DRUG_DIM)),
        "lstm": pack_lstm_params(init_lstm_params(kp[3], TS_FEAT)),
    }

    x_icd = jax.random.normal(kx[0], (BZ, ICD_DIM), jnp.float32)
    x_demo = jax.random.normal(kx[1], (BZ, DEMO_DIM), jnp.float32)
    x_drug = jax.random.normal(kx[2], (BZ, DRUG_DIM), jnp.float32)
    x_ts = jax.random.normal(kx[3], (BZ, TS_LEN, TS_FEAT), jnp.float32)

    outs = []
    outs.append(medcsp_forward(params, x_icd, "icd"))
    outs.append(medcsp_forward(params, x_demo, "demo"))
    outs.append(medcsp_forward(params, x_drug, "drug"))
    outs.append(medcsp_forward(params, x_ts, "time_series"))

    for o in outs:
        jax.block_until_ready(o)
        assert o.shape == (BZ, 512) and o.dtype == jnp.float32
        assert bool(jnp.all(jnp.isfinite(o)))

    print("KERNEL_OK")
</pallas_src>

<mosaic_0001>
module attributes {stable_mosaic.version = 11 : i64} {
  func.func @mlp_medcsp_kernel(%arg0: i32, %arg1: memref<8x128xf32, #tpu.memory_space<vmem>>, %arg2: memref<128x128xbf16, #tpu.memory_space<vmem>>, %arg3: memref<1x128xf32, #tpu.memory_space<vmem>>, %arg4: memref<1x128xf32, #tpu.memory_space<vmem>>, %arg5: memref<1x128xf32, #tpu.memory_space<vmem>>, %arg6: memref<128x512xbf16, #tpu.memory_space<vmem>>, %arg7: memref<1x512xf32, #tpu.memory_space<vmem>>, %arg8: memref<1x512xf32, #tpu.memory_space<vmem>>, %arg9: memref<1x512xf32, #tpu.memory_space<vmem>>, %arg10: memref<1x512xf32, #tpu.memory_space<vmem>>, %arg11: memref<1x512xf32, #tpu.memory_space<vmem>>, %arg12: memref<8x512xf32, #tpu.memory_space<vmem>>) attributes {dimension_semantics = [#tpu.dimension_semantics<parallel>], iteration_bounds = array<i64: 1>, scalar_prefetch = 0 : i64, scratch_operands = 0 : i64, tpu.core_type = #tpu.core_type<tc>, window_params = [{transform_indices = @transform_0, window_bounds = array<i64: 8, 128>}, {pipeline_mode = #tpu.pipeline_mode<synchronous>, transform_indices = @transform_1, window_bounds = array<i64: 128, 128>}, {pipeline_mode = #tpu.pipeline_mode<synchronous>, transform_indices = @transform_2, window_bounds = array<i64: 1, 128>}, {pipeline_mode = #tpu.pipeline_mode<synchronous>, transform_indices = @transform_3, window_bounds = array<i64: 1, 128>}, {pipeline_mode = #tpu.pipeline_mode<synchronous>, transform_indices = @transform_4, window_bounds = array<i64: 1, 128>}, {pipeline_mode = #tpu.pipeline_mode<synchronous>, transform_indices = @transform_5, window_bounds = array<i64: 128, 512>}, {pipeline_mode = #tpu.pipeline_mode<synchronous>, transform_indices = @transform_6, window_bounds = array<i64: 1, 512>}, {pipeline_mode = #tpu.pipeline_mode<synchronous>, transform_indices = @transform_7, window_bounds = array<i64: 1, 512>}, {pipeline_mode = #tpu.pipeline_mode<synchronous>, transform_indices = @transform_8, window_bounds = array<i64: 1, 512>}, {pipeline_mode = #tpu.pipeline_mode<synchronous>, transform_indices = @transform_9, window_bounds = array<i64: 1, 512>}, {pipeline_mode = #tpu.pipeline_mode<synchronous>, transform_indices = @transform_10, window_bounds = array<i64: 1, 512>}, {transform_indices = @transform_11, window_bounds = array<i64: 8, 512>}]} {
    %c0 = arith.constant 0 : index
    %c0_0 = arith.constant 0 : index
    %0 = vector.load %arg1[%c0, %c0_0] : memref<8x128xf32, #tpu.memory_space<vmem>>, vector<8x128xf32>
    %1 = arith.truncf %0 : vector<8x128xf32> to vector<8x128xbf16>
    %c0_1 = arith.constant 0 : index
    %c0_2 = arith.constant 0 : index
    %2 = vector.load %arg2[%c0_1, %c0_2] : memref<128x128xbf16, #tpu.memory_space<vmem>>, vector<128x128xbf16>
    %cst = arith.constant dense<0.000000e+00> : vector<8x128xf32>
    %3 = tpu.matmul %1, %2, %cst {dimension_numbers = #tpu.dot_dimension_numbers<[1], [0], [0], [1], [0, 0, 1, 1], [], []>} : vector<8x128xbf16>, vector<128x128xbf16>, vector<8x128xf32> -> vector<8x128xf32>
    %c0_3 = arith.constant 0 : index
    %c0_4 = arith.constant 0 : index
    %4 = vector.load %arg3[%c0_3, %c0_4] : memref<1x128xf32, #tpu.memory_space<vmem>>, vector<1x128xf32>
    %5 = vector.broadcast %4 : vector<1x128xf32> to vector<8x128xf32>
    %6 = arith.addf %3, %5 : vector<8x128xf32>
    %cst_5 = arith.constant 0.000000e+00 : f32
    %7 = vector.broadcast %cst_5 : f32 to vector<8x128xf32>
    %8 = arith.maximumf %6, %7 : vector<8x128xf32>
    %c0_6 = arith.constant 0 : index
    %c0_7 = arith.constant 0 : index
    %9 = vector.load %arg4[%c0_6, %c0_7] : memref<1x128xf32, #tpu.memory_space<vmem>>, vector<1x128xf32>
    %c0_8 = arith.constant 0 : index
    %c0_9 = arith.constant 0 : index
    %10 = vector.load %arg5[%c0_8, %c0_9] : memref<1x128xf32, #tpu.memory_space<vmem>>, vector<1x128xf32>
    %cst_10 = arith.constant dense<0.000000e+00> : vector<8xf32>
    %11 = vector.multi_reduction <add>, %8, %cst_10 [1] : vector<8x128xf32> to vector<8xf32>
    %12 = vector.shape_cast %11 : vector<8xf32> to vector<8x1xf32>
    %cst_11 = arith.constant 1.562500e-02 : f32
    %13 = vector.broadcast %cst_11 : f32 to vector<8x1xf32>
    %14 = arith.mulf %12, %13 : vector<8x1xf32>
    %15 = vector.broadcast %14 : vector<8x1xf32> to vector<8x128xf32>
    %16 = arith.subf %8, %15 : vector<8x128xf32>
    %17 = arith.mulf %16, %16 : vector<8x128xf32>
    %cst_12 = arith.constant dense<0.000000e+00> : vector<8xf32>
    %18 = vector.multi_reduction <add>, %17, %cst_12 [1] : vector<8x128xf32> to vector<8xf32>
    %19 = vector.shape_cast %18 : vector<8xf32> to vector<8x1xf32>
    %cst_13 = arith.constant 6.400000e+01 : f32
    %20 = vector.broadcast %cst_13 : f32 to vector<8x1xf32>
    %21 = arith.mulf %20, %14 : vector<8x1xf32>
    %22 = arith.mulf %21, %14 : vector<8x1xf32>
    %23 = arith.subf %19, %22 : vector<8x1xf32>
    %cst_14 = arith.constant 1.562500e-02 : f32
    %24 = vector.broadcast %cst_14 : f32 to vector<8x1xf32>
    %25 = arith.mulf %23, %24 : vector<8x1xf32>
    %cst_15 = arith.constant 9.99999974E-6 : f32
    %26 = vector.broadcast %cst_15 : f32 to vector<8x1xf32>
    %27 = arith.addf %25, %26 : vector<8x1xf32>
    %28 = math.rsqrt %27 : vector<8x1xf32>
    %29 = vector.broadcast %28 : vector<8x1xf32> to vector<8x128xf32>
    %30 = arith.mulf %16, %29 : vector<8x128xf32>
    %31 = vector.broadcast %9 : vector<1x128xf32> to vector<8x128xf32>
    %32 = arith.mulf %30, %31 : vector<8x128xf32>
    %33 = vector.broadcast %10 : vector<1x128xf32> to vector<8x128xf32>
    %34 = arith.addf %32, %33 : vector<8x128xf32>
    %35 = arith.truncf %34 : vector<8x128xf32> to vector<8x128xbf16>
    %c0_16 = arith.constant 0 : index
    %c0_17 = arith.constant 0 : index
    %36 = vector.load %arg6[%c0_16, %c0_17] : memref<128x512xbf16, #tpu.memory_space<vmem>>, vector<128x512xbf16>
    %cst_18 = arith.constant dense<0.000000e+00> : vector<8x512xf32>
    %37 = tpu.matmul %35, %36, %cst_18 {dimension_numbers = #tpu.dot_dimension_numbers<[1], [0], [0], [1], [0, 0, 1, 1], [], []>} : vector<8x128xbf16>, vector<128x512xbf16>, vector<8x512xf32> -> vector<8x512xf32>
    %c0_19 = arith.constant 0 : index
    %c0_20 = arith.constant 0 : index
    %38 = vector.load %arg7[%c0_19, %c0_20] : memref<1x512xf32, #tpu.memory_space<vmem>>, vector<1x512xf32>
    %39 = vector.broadcast %38 : vector<1x512xf32> to vector<8x512xf32>
    %40 = arith.addf %37, %39 : vector<8x512xf32>
    %c0_21 = arith.constant 0 : index
    %c0_22 = arith.constant 0 : index
    %41 = vector.load %arg8[%c0_21, %c0_22] : memref<1x512xf32, #tpu.memory_space<vmem>>, vector<1x512xf32>
    %c0_23 = arith.constant 0 : index
    %c0_24 = arith.constant 0 : index
    %42 = vector.load %arg9[%c0_23, %c0_24] : memref<1x512xf32, #tpu.memory_space<vmem>>, vector<1x512xf32>
    %cst_25 = arith.constant dense<0.000000e+00> : vector<8xf32>
    %43 = vector.multi_reduction <add>, %40, %cst_25 [1] : vector<8x512xf32> to vector<8xf32>
    %44 = vector.shape_cast %43 : vector<8xf32> to vector<8x1xf32>
    %cst_26 = arith.constant 0.001953125 : f32
    %45 = vector.broadcast %cst_26 : f32 to vector<8x1xf32>
    %46 = arith.mulf %44, %45 : vector<8x1xf32>
    %47 = vector.broadcast %46 : vector<8x1xf32> to vector<8x512xf32>
    %48 = arith.subf %40, %47 : vector<8x512xf32>
    %49 = arith.mulf %48, %48 : vector<8x512xf32>
    %cst_27 = arith.constant dense<0.000000e+00> : vector<8xf32>
    %50 = vector.multi_reduction <add>, %49, %cst_27 [1] : vector<8x512xf32> to vector<8xf32>
    %51 = vector.shape_cast %50 : vector<8xf32> to vector<8x1xf32>
    %cst_28 = arith.constant 0.001953125 : f32
    %52 = vector.broadcast %cst_28 : f32 to vector<8x1xf32>
    %53 = arith.mulf %51, %52 : vector<8x1xf32>
    %cst_29 = arith.constant 9.99999974E-6 : f32
    %54 = vector.broadcast %cst_29 : f32 to vector<8x1xf32>
    %55 = arith.addf %53, %54 : vector<8x1xf32>
    %56 = math.rsqrt %55 : vector<8x1xf32>
    %57 = vector.broadcast %56 : vector<8x1xf32> to vector<8x512xf32>
    %58 = arith.mulf %48, %57 : vector<8x512xf32>
    %59 = vector.broadcast %41 : vector<1x512xf32> to vector<8x512xf32>
    %60 = arith.mulf %58, %59 : vector<8x512xf32>
    %61 = vector.broadcast %42 : vector<1x512xf32> to vector<8x512xf32>
    %62 = arith.addf %60, %61 : vector<8x512xf32>
    %cst_30 = arith.constant 0.000000e+00 : f32
    %63 = vector.broadcast %cst_30 : f32 to vector<8x512xf32>
    %64 = arith.maximumf %62, %63 : vector<8x512xf32>
    %c0_31 = arith.constant 0 : index
    %c0_32 = arith.constant 0 : index
    %65 = vector.load %arg10[%c0_31, %c0_32] : memref<1x512xf32, #tpu.memory_space<vmem>>, vector<1x512xf32>
    %c0_33 = arith.constant 0 : index
    %c0_34 = arith.constant 0 : index
    %66 = vector.load %arg11[%c0_33, %c0_34] : memref<1x512xf32, #tpu.memory_space<vmem>>, vector<1x512xf32>
    %cst_35 = arith.constant dense<0.000000e+00> : vector<8xf32>
    %67 = vector.multi_reduction <add>, %64, %cst_35 [1] : vector<8x512xf32> to vector<8xf32>
    %68 = vector.shape_cast %67 : vector<8xf32> to vector<8x1xf32>
    %cst_36 = arith.constant 0.001953125 : f32
    %69 = vector.broadcast %cst_36 : f32 to vector<8x1xf32>
    %70 = arith.mulf %68, %69 : vector<8x1xf32>
    %71 = vector.broadcast %70 : vector<8x1xf32> to vector<8x512xf32>
    %72 = arith.subf %64, %71 : vector<8x512xf32>
    %73 = arith.mulf %72, %72 : vector<8x512xf32>
    %cst_37 = arith.constant dense<0.000000e+00> : vector<8xf32>
    %74 = vector.multi_reduction <add>, %73, %cst_37 [1] : vector<8x512xf32> to vector<8xf32>
    %75 = vector.shape_cast %74 : vector<8xf32> to vector<8x1xf32>
    %cst_38 = arith.constant 0.001953125 : f32
    %76 = vector.broadcast %cst_38 : f32 to vector<8x1xf32>
    %77 = arith.mulf %75, %76 : vector<8x1xf32>
    %cst_39 = arith.constant 9.99999974E-6 : f32
    %78 = vector.broadcast %cst_39 : f32 to vector<8x1xf32>
    %79 = arith.addf %77, %78 : vector<8x1xf32>
    %80 = math.rsqrt %79 : vector<8x1xf32>
    %81 = vector.broadcast %80 : vector<8x1xf32> to vector<8x512xf32>
    %82 = arith.mulf %72, %81 : vector<8x512xf32>
    %83 = vector.broadcast %65 : vector<1x512xf32> to vector<8x512xf32>
    %84 = arith.mulf %82, %83 : vector<8x512xf32>
    %85 = vector.broadcast %66 : vector<1x512xf32> to vector<8x512xf32>
    %86 = arith.addf %84, %85 : vector<8x512xf32>
    %c0_40 = arith.constant 0 : index
    %c0_41 = arith.constant 0 : index
    %87 = vector.load %arg12[%c0_40, %c0_41] : memref<8x512xf32, #tpu.memory_space<vmem>>, vector<8x512xf32>
    tpu.vector_store %arg12[%c0_40, %c0_41], %86 {strides = array<i32>} : memref<8x512xf32, #tpu.memory_space<vmem>>, vector<8x512xf32>,
    return
  }
  func.func @transform_0(%arg0: i32) -> (i32, i32) {
    %c0_i32 = arith.constant 0 : i32
    %c0_i32_0 = arith.constant 0 : i32
    return %arg0, %c0_i32 : i32, i32
  }
  func.func @transform_1(%arg0: i32) -> (i32, i32) {
    %c0_i32 = arith.constant 0 : i32
    %c0_i32_0 = arith.constant 0 : i32
    %c0_i32_1 = arith.constant 0 : i32
    return %c0_i32, %c0_i32_0 : i32, i32
  }
  func.func @transform_2(%arg0: i32) -> (i32, i32) {
    %c0_i32 = arith.constant 0 : i32
    %c0_i32_0 = arith.constant 0 : i32
    %c0_i32_1 = arith.constant 0 : i32
    return %c0_i32, %c0_i32_0 : i32, i32
  }
  func.func @transform_3(%arg0: i32) -> (i32, i32) {
    %c0_i32 = arith.constant 0 : i32
    %c0_i32_0 = arith.constant 0 : i32
    %c0_i32_1 = arith.constant 0 : i32
    return %c0_i32, %c0_i32_0 : i32, i32
  }
  func.func @transform_4(%arg0: i32) -> (i32, i32) {
    %c0_i32 = arith.constant 0 : i32
    %c0_i32_0 = arith.constant 0 : i32
    %c0_i32_1 = arith.constant 0 : i32
    return %c0_i32, %c0_i32_0 : i32, i32
  }
  func.func @transform_5(%arg0: i32) -> (i32, i32) {
    %c0_i32 = arith.constant 0 : i32
    %c0_i32_0 = arith.constant 0 : i32
    %c0_i32_1 = arith.constant 0 : i32
    return %c0_i32, %c0_i32_0 : i32, i32
  }
  func.func @transform_6(%arg0: i32) -> (i32, i32) {
    %c0_i32 = arith.constant 0 : i32
    %c0_i32_0 = arith.constant 0 : i32
    %c0_i32_1 = arith.constant 0 : i32
    return %c0_i32, %c0_i32_0 : i32, i32
  }
  func.func @transform_7(%arg0: i32) -> (i32, i32) {
    %c0_i32 = arith.constant 0 : i32
    %c0_i32_0 = arith.constant 0 : i32
    %c0_i32_1 = arith.constant 0 : i32
    return %c0_i32, %c0_i32_0 : i32, i32
  }
  func.func @transform_8(%arg0: i32) -> (i32, i32) {
    %c0_i32 = arith.constant 0 : i32
    %c0_i32_0 = arith.constant 0 : i32
    %c0_i32_1 = arith.constant 0 : i32
    return %c0_i32, %c0_i32_0 : i32, i32
  }
  func.func @transform_9(%arg0: i32) -> (i32, i32) {
    %c0_i32 = arith.constant 0 : i32
    %c0_i32_0 = arith.constant 0 : i32
    %c0_i32_1 = arith.constant 0 : i32
    return %c0_i32, %c0_i32_0 : i32, i32
  }
  func.func @transform_10(%arg0: i32) -> (i32, i32) {
    %c0_i32 = arith.constant 0 : i32
    %c0_i32_0 = arith.constant 0 : i32
    %c0_i32_1 = arith.constant 0 : i32
    return %c0_i32, %c0_i32_0 : i32, i32
  }
  func.func @transform_11(%arg0: i32) -> (i32, i32) {
    %c0_i32 = arith.constant 0 : i32
    %c0_i32_0 = arith.constant 0 : i32
    return %arg0, %c0_i32 : i32, i32
  }
}

</mosaic_0001>

<llo_original>
// kernel: tpu_custom_call.1
$region0: #{tpu_custom_call.1}
  #allocation0 [shape = 'u32[]', space=smem, size = 0x4, offset = 0x4, fixed_abs, tag = 'smem constant byte address 0x4 - core index']
  #allocation1 [shape = 'u32[144,128]{1,0:T(1,128)}', space=vmem, size = 0x12000, scoped, tag = 'internal scratch']
  %s0 = inlined_call_operand.hbm [shape: f32[8,128], index: 0, kind: input, shape index: {}]
  %s1 = inlined_call_operand.hbm [shape: bf16[128,128], index: 1, kind: input, shape index: {}]
  %s2 = inlined_call_operand.vmem [shape: f32[1,128], index: 2, kind: input, shape index: {}]
  %s3 = inlined_call_operand.vmem [shape: f32[1,128], index: 3, kind: input, shape index: {}]
  %s4 = inlined_call_operand.hbm [shape: f32[1,128], index: 4, kind: input, shape index: {}]
  %s5 = inlined_call_operand.hbm [shape: bf16[128,512], index: 5, kind: input, shape index: {}]
  %s6 = inlined_call_operand.vmem [shape: f32[1,512], index: 6, kind: input, shape index: {}]
  %s7 = inlined_call_operand.vmem [shape: f32[1,512], index: 7, kind: input, shape index: {}]
  %s8 = inlined_call_operand.vmem [shape: f32[1,512], index: 8, kind: input, shape index: {}]
  %s9 = inlined_call_operand.vmem [shape: f32[1,512], index: 9, kind: input, shape index: {}]
  %s10 = inlined_call_operand.vmem [shape: f32[1,512], index: 10, kind: input, shape index: {}]
  %s11 = inlined_call_operand.hbm [shape: f32[8,512], index: 11, kind: output, shape index: {}]
  %s12 = sld [smem:[#allocation0]]
  $region70: #{tpu_custom_call.1} parent=0
    _
  %s14 = ssub.s32 1, %s12
  %s15 = scalar_select 0, %s14, %s12
  $region1: #{tpu_custom_call.1} parent=0
    #allocation2 [shape = 'u8[4096]{0}', space=vmem, size = 0x1000, scoped, tag = 'input window, operand 0, single buffered']
    #allocation3 [shape = 's32[1]{0}', space=sflag, size = 0x4, scoped, tag = 'scoped memory for tpu_custom_call.1']
    #allocation4 [shape = 's32[1]{0}', space=sflag, size = 0x4, scoped, tag = 'scoped memory for tpu_custom_call.1']
    #allocation5 [shape = 'u8[32768]{0}', space=vmem, size = 0x8000, scoped, tag = 'input window, operand 1, single buffered']
    #allocation6 [shape = 's32[1]{0}', space=sflag, size = 0x4, scoped, tag = 'scoped memory for tpu_custom_call.1']
    #allocation7 [shape = 'u8[512]{0}', space=vmem, size = 0x400, scoped, tag = 'input window, operand 4, single buffered']
    #allocation8 [shape = 'u8[131072]{0}', space=vmem, size = 0x20000, scoped, tag = 'input window, operand 5, single buffered']
    #allocation9 [shape = 's32[1]{0}', space=sflag, size = 0x4, scoped, tag = 'scoped memory for tpu_custom_call.1']
    #allocation10 [shape = 'u8[16384]{0}', space=vmem, size = 0x4000, scoped, tag = 'output window, operand 0, single buffered']
    %16 = vsyncpa [#allocation3], 0
    %17 = vsyncpa [#allocation6], 0
    %18 = vsyncpa [#allocation9], 0
    %19 = vsyncpa [#allocation4], 0
    // Predicated region
    $region2: #{tpu_custom_call.1} parent=1 // pred_check
      _
    $region3: #{tpu_custom_call.1} parent=1 // pred_check_branch
      %21 = sbr.rel (0) target = $region5
    $region4: #{tpu_custom_call.1} parent=1 // pred_region
      %s23 = ssub.s32 128, 128
      %24 = vsyncadd [#allocation3], %s23
      %s26 = sshll.u32 [#allocation2], 4
      %s27 = int_to_ptr.vmem [resolvable:$true] %s26
      %29 = dma.hbm_to_vmem [thread:$0]  %s0, 128, %s27, [#allocation3]
    $region5: #{tpu_custom_call.1} parent=1 // pred_fallthru
      _
    // Predicated region
    $region6: #{tpu_custom_call.1} parent=1 // pred_check
      _
    $region7: #{tpu_custom_call.1} parent=1 // pred_check_branch
      %31 = sbr.rel (0) target = $region9
    $region8: #{tpu_custom_call.1} parent=1 // pred_region
      %s33 = ssub.s32 1024, 1024
      %34 = vsyncadd [#allocation6], %s33
      %s35 = sshll.u32 [#allocation5], 4
      %s36 = int_to_ptr.vmem [resolvable:$true] %s35
      %41 = dma.hbm_to_vmem [thread:$0]  %s1, 1024, %s36, [#allocation6], 64, 64, 4
    $region9: #{tpu_custom_call.1} parent=1 // pred_fallthru
      _
    // Predicated region
    $region10: #{tpu_custom_call.1} parent=1 // pred_check
      _
    $region11: #{tpu_custom_call.1} parent=1 // pred_check_branch
      %43 = sbr.rel (0) target = $region13
    $region12: #{tpu_custom_call.1} parent=1 // pred_region
      _
    $region13: #{tpu_custom_call.1} parent=1 // pred_fallthru
      _
    // Predicated region
    $region14: #{tpu_custom_call.1} parent=1 // pred_check
      _
    $region15: #{tpu_custom_call.1} parent=1 // pred_check_branch
      %45 = sbr.rel (0) target = $region17
    $region16: #{tpu_custom_call.1} parent=1 // pred_region
      _
    $region17: #{tpu_custom_call.1} parent=1 // pred_fallthru
      _
    // Predicated region
    $region18: #{tpu_custom_call.1} parent=1 // pred_check
      _
    $region19: #{tpu_custom_call.1} parent=1 // pred_check_branch
      %47 = sbr.rel (0) target = $region21
    $region20: #{tpu_custom_call.1} parent=1 // pred_region
      %s49 = ssub.s32 16, 16
      %50 = vsyncadd [#allocation6], %s49
      %s52 = sshll.u32 [#allocation7], 4
      %s53 = int_to_ptr.vmem [resolvable:$true] %s52
      %55 = dma.hbm_to_vmem [thread:$0]  %s4, 16, %s53, [#allocation6]
    $region21: #{tpu_custom_call.1} parent=1 // pred_fallthru
      _
    // Predicated region
    $region22: #{tpu_custom_call.1} parent=1 // pred_check
      _
    $region23: #{tpu_custom_call.1} parent=1 // pred_check_branch
      %57 = sbr.rel (0) target = $region25
    $region24: #{tpu_custom_call.1} parent=1 // pred_region
      %s59 = ssub.s32 4096, 4096
      %60 = vsyncadd [#allocation9], %s59
      %s61 = sshll.u32 [#allocation8], 4
      %s62 = int_to_ptr.vmem [resolvable:$true] %s61
      %67 = dma.hbm_to_vmem [thread:$0]  %s5, 4096, %s62, [#allocation9], 256, 256, 16
    $region25: #{tpu_custom_call.1} parent=1 // pred_fallthru
      _
    // Predicated region
    $region26: #{tpu_custom_call.1} parent=1 // pred_check
      _
    $region27: #{tpu_custom_call.1} parent=1 // pred_check_branch
      %69 = sbr.rel (0) target = $region29
    $region28: #{tpu_custom_call.1} parent=1 // pred_region
      _
    $region29: #{tpu_custom_call.1} parent=1 // pred_fallthru
      _
    // Predicated region
    $region30: #{tpu_custom_call.1} parent=1 // pred_check
      _
    $region31: #{tpu_custom_call.1} parent=1 // pred_check_branch
      %71 = sbr.rel (0) target = $region33
    $region32: #{tpu_custom_call.1} parent=1 // pred_region
      _
    $region33: #{tpu_custom_call.1} parent=1 // pred_fallthru
      _
    // Predicated region
    $region34: #{tpu_custom_call.1} parent=1 // pred_check
      _
    $region35: #{tpu_custom_call.1} parent=1 // pred_check_branch
      %73 = sbr.rel (0) target = $region37
    $region36: #{tpu_custom_call.1} parent=1 // pred_region
      _
    $region37: #{tpu_custom_call.1} parent=1 // pred_fallthru
      _
    // Predicated region
    $region38: #{tpu_custom_call.1} parent=1 // pred_check
      _
    $region39: #{tpu_custom_call.1} parent=1 // pred_check_branch
      %75 = sbr.rel (0) target = $region41
    $region40: #{tpu_custom_call.1} parent=1 // pred_region
      _
    $region41: #{tpu_custom_call.1} parent=1 // pred_fallthru
      _
    // Predicated region
    $region42: #{tpu_custom_call.1} parent=1 // pred_check
      _
    $region43: #{tpu_custom_call.1} parent=1 // pred_check_branch
      %77 = sbr.rel (0) target = $region45
    $region44: #{tpu_custom_call.1} parent=1 // pred_region
      _
    $region45: #{tpu_custom_call.1} parent=1 // pred_fallthru
      _
    // Predicated region
    $region46: #{tpu_custom_call.1} parent=1 // pred_check
      _
    $region47: #{tpu_custom_call.1} parent=1 // pred_check_branch
      %79 = sbr.rel (0) target = $region49
    $region48: #{tpu_custom_call.1} parent=1 // pred_region
      %80 = dma.done [#allocation3], 128
    $region49: #{tpu_custom_call.1} parent=1 // pred_fallthru
      _
    // Predicated region
    $region50: #{tpu_custom_call.1} parent=1 // pred_check
      _
    $region51: #{tpu_custom_call.1} parent=1 // pred_check_branch
      %82 = sbr.rel (0) target = $region53
    $region52: #{tpu_custom_call.1} parent=1 // pred_region
      %83 = dma.done [#allocation6], 1024
    $region53: #{tpu_custom_call.1} parent=1 // pred_fallthru
      _
    // Predicated region
    $region54: #{tpu_custom_call.1} parent=1 // pred_check
      _
    $region55: #{tpu_custom_call.1} parent=1 // pred_check_branch
      %85 = sbr.rel (0) target = $region57
    $region56: #{tpu_custom_call.1} parent=1 // pred_region
      %86 = dma.done [#allocation6], 16
    $region57: #{tpu_custom_call.1} parent=1 // pred_fallthru
      _
    // Predicated region
    $region58: #{tpu_custom_call.1} parent=1 // pred_check
      _
    $region59: #{tpu_custom_call.1} parent=1 // pred_check_branch
      %88 = sbr.rel (0) target = $region61
    $region60: #{tpu_custom_call.1} parent=1 // pred_region
      %89 = dma.done [#allocation9], 4096
    $region61: #{tpu_custom_call.1} parent=1 // pred_fallthru
      _
    %v91 = vld [vmem:[#allocation2] sm:$0xff]
    %v92 = vpack.c.bf16 %v91, %v91
    %v93 = vld [vmem:[#allocation5] sm:$0xf]
    %v94 = vld [vmem:[#allocation5 + $0x4] sm:$0xf]
    %v95 = vld [vmem:[#allocation5 + $0x8] sm:$0xf]
    %v96 = vld [vmem:[#allocation5 + $0xc] sm:$0xf]
    %v97 = vld [vmem:[#allocation5 + $0x10] sm:$0xf]
    %v98 = vld [vmem:[#allocation5 + $0x14] sm:$0xf]
    %v99 = vld [vmem:[#allocation5 + $0x18] sm:$0xf]
    %v100 = vld [vmem:[#allocation5 + $0x1c] sm:$0xf]
    %v101 = vld [vmem:[#allocation5 + $0x20] sm:$0xf]
    %v102 = vld [vmem:[#allocation5 + $0x24] sm:$0xf]
    %v103 = vld [vmem:[#allocation5 + $0x28] sm:$0xf]
    %v104 = vld [vmem:[#allocation5 + $0x2c] sm:$0xf]
    %v105 = vld [vmem:[#allocation5 + $0x30] sm:$0xf]
    %v106 = vld [vmem:[#allocation5 + $0x34] sm:$0xf]
    %v107 = vld [vmem:[#allocation5 + $0x38] sm:$0xf]
    %v108 = vld [vmem:[#allocation5 + $0x3c] sm:$0xf]
    %v109 = vld [vmem:[%s2] sm:$0x1]
    %v111 = vlaneseq
    %v112 = vshrl.u32 %v111, 7
    %v113 = vsub.s32 0, %v112
    %v114 = vrot.slane %v109, %v113
    %v132 = vunpack.c.l.b16 %v93
    %v133 = vunpack.c.l.b16 %v94
    %v134 = vunpack.c.l.b16 %v95
    %v135 = vunpack.c.l.b16 %v96
    %v136 = vunpack.c.l.b16 %v97
    %v137 = vunpack.c.l.b16 %v98
    %v138 = vunpack.c.l.b16 %v99
    %v139 = vunpack.c.l.b16 %v100
    %v140 = vunpack.c.l.b16 %v101
    %v141 = vunpack.c.l.b16 %v102
    %v142 = vunpack.c.l.b16 %v103
    %v143 = vunpack.c.l.b16 %v104
    %v144 = vunpack.c.l.b16 %v105
    %v145 = vunpack.c.l.b16 %v106
    %v146 = vunpack.c.l.b16 %v107
    %v147 = vunpack.c.l.b16 %v108
    %v148 = vpack.c.b16 %v133, %v132
    %v149 = vpack.c.b16 %v135, %v134
    %v150 = vpack.c.b16 %v137, %v136
    %v151 = vpack.c.b16 %v139, %v138
    %v152 = vpack.c.b16 %v141, %v140
    %v153 = vpack.c.b16 %v143, %v142
    %v154 = vpack.c.b16 %v145, %v144
    %v155 = vpack.c.b16 %v147, %v146
    %164 = vmatprep.subr.bf16.mxu0 0
    %165 = vmatpush1.bf16.msra.mxu0 %v148
    %166 = vmatprep.subr.bf16.mxu0 0
    %167 = vmatpush1.bf16.msra.mxu0 %v149
    %168 = vmatprep.subr.bf16.mxu0 0
    %169 = vmatpush1.bf16.msra.mxu0 %v150
    %170 = vmatprep.subr.bf16.mxu0 0
    %171 = vmatpush1.bf16.msra.mxu0 %v151
    %172 = vmatprep.subr.bf16.mxu0 0
    %173 = vmatpush1.bf16.msra.mxu0 %v152
    %174 = vmatprep.subr.bf16.mxu0 0
    %175 = vmatpush1.bf16.msra.mxu0 %v153
    %176 = vmatprep.subr.bf16.mxu0 0
    %177 = vmatpush1.bf16.msra.mxu0 %v154
    %178 = vmatprep.subr.bf16.mxu0 0
    %179 = vmatpush1.bf16.msra.mxu0 %v155
    %180 = vmatprep.subr.bf16.mxu0 0
    %181 = vmatpush1.bf16.msra.mxu0 0
    %182 = vmatprep.subr.bf16.mxu0 0
    %183 = vmatpush1.bf16.msra.mxu0 0
    %184 = vmatprep.subr.bf16.mxu0 0
    %185 = vmatpush1.bf16.msra.mxu0 0
    %186 = vmatprep.subr.bf16.mxu0 0
    %187 = vmatpush1.bf16.msra.mxu0 0
    %188 = vmatprep.subr.bf16.mxu0 0
    %189 = vmatpush1.bf16.msra.mxu0 0
    %190 = vmatprep.subr.bf16.mxu0 0
    %191 = vmatpush1.bf16.msra.mxu0 0
    %192 = vmatprep.subr.bf16.mxu0 0
    %193 = vmatpush1.bf16.msra.mxu0 0
    %194 = vmatprep.subr.bf16.mxu0 0
    %195 = vmatpush1.bf16.msra.mxu0 0
    %196 = vmatprep.mubr.bf16.mxu0 0
    %197 = vmatmul.mubr.bf16.gmra.mrb[0].mxu0 %v92
    %v198 = vpop.f32.mrb[0].mxu0
    %v199 = vadd.f32 %v114, %v198
    %v200 = vpop.f32.mrb[0].mxu0
    %v201 = vpop.f32.mrb[0].mxu0
    %v202 = vpop.f32.mrb[0].mxu0
    %203 = vdwg.mxu0
    %v204 = vmax.f32 %v199, 0.0
    %v205 = vld [vmem:[%s3] sm:$0x1]
    %v206 = vld [vmem:[#allocation7] sm:$0x1]
    %207 = vadd.xlane.f32.xlu0 %v204
    %v208 = vpop.xlane.xlu0 %207
    %v209 = vmul.f32 %v208, 0.015625
    %v210 = vsub.f32 %v204, %v209
    %v211 = vmul.f32 %v210, %v210
    %212 = vadd.xlane.f32.xlu0 %v211
    %v213 = vpop.xlane.xlu0 %212
    %v214 = vmul.f32 %v209, 64.0
    %v215 = vmul.f32 %v214, %v209
    %v216 = vsub.f32 %v213, %v215
    %v217 = vmul.f32 %v216, 0.015625
    %v218 = vadd.f32 %v217, 1e-05
    %v219 = vrsqrt.pop %v218
    %v220 = vmul.f32 %v210, %v219
    %v222 = vlaneseq
    %v223 = vshrl.u32 %v222, 7
    %v224 = vsub.s32 0, %v223
    %v225 = vrot.slane %v205, %v224
    %v227 = vmul.f32 %v220, %v225
    %v229 = vlaneseq
    %v230 = vshrl.u32 %v229, 7
    %v231 = vsub.s32 0, %v230
    %v232 = vrot.slane %v206, %v231
    %v234 = vadd.f32 %v227, %v232
    %v235 = vpack.c.bf16 %v234, %v234
    %v236 = vld [vmem:[#allocation8] sm:$0xff]
    %v237 = vld [vmem:[#allocation8 + $0x8] sm:$0xff]
    %v238 = vld [vmem:[#allocation8 + $0x10] sm:$0xff]
    %v239 = vld [vmem:[#allocation8 + $0x18] sm:$0xff]
    %v240 = vld [vmem:[#allocation8 + $0x20] sm:$0xff]
    %v241 = vld [vmem:[#allocation8 + $0x28] sm:$0xff]
    %v242 = vld [vmem:[#allocation8 + $0x30] sm:$0xff]
    %v243 = vld [vmem:[#allocation8 + $0x38] sm:$0xff]
    %v244 = vld [vmem:[#allocation8 + $0x40] sm:$0xff]
    %v245 = vld [vmem:[#allocation8 + $0x48] sm:$0xff]
    %v246 = vld [vmem:[#allocation8 + $0x50] sm:$0xff]
    %v247 = vld [vmem:[#allocation8 + $0x58] sm:$0xff]
    %v248 = vld [vmem:[#allocation8 + $0x60] sm:$0xff]
    %v249 = vld [vmem:[#allocation8 + $0x68] sm:$0xff]
    %v250 = vld [vmem:[#allocation8 + $0x70] sm:$0xff]
    %v251 = vld [vmem:[#allocation8 + $0x78] sm:$0xff]
    %v252 = vld [vmem:[#allocation8 + $0x80] sm:$0xff]
    %v253 = vld [vmem:[#allocation8 + $0x88] sm:$0xff]
    %v254 = vld [vmem:[#allocation8 + $0x90] sm:$0xff]
    %v255 = vld [vmem:[#allocation8 + $0x98] sm:$0xff]
    %v256 = vld [vmem:[#allocation8 + $0xa0] sm:$0xff]
    %v257 = vld [vmem:[#allocation8 + $0xa8] sm:$0xff]
    %v258 = vld [vmem:[#allocation8 + $0xb0] sm:$0xff]
    %v259 = vld [vmem:[#allocation8 + $0xb8] sm:$0xff]
    %v260 = vld [vmem:[#allocation8 + $0xc0] sm:$0xff]
    %v261 = vld [vmem:[#allocation8 + $0xc8] sm:$0xff]
    %v262 = vld [vmem:[#allocation8 + $0xd0] sm:$0xff]
    %v263 = vld [vmem:[#allocation8 + $0xd8] sm:$0xff]
    %v264 = vld [vmem:[#allocation8 + $0xe0] sm:$0xff]
    %v265 = vld [vmem:[#allocation8 + $0xe8] sm:$0xff]
    %v266 = vld [vmem:[#allocation8 + $0xf0] sm:$0xff]
    %v267 = vld [vmem:[#allocation8 + $0xf8] sm:$0xff]
    %v268 = vld [vmem:[%s6] sm:$0xf]
    %v270 = vlaneseq
    %v271 = vshrl.u32 %v270, 7
    %v272 = vsub.s32 0, %v271
    %v273 = vrot.slane %v268, %v272
    %v274 = vlaneseq
    %v275 = vshrl.u32 %v274, 7
    %v276 = vsub.s32 1, %v275
    %v277 = vrot.slane %v268, %v276
    %v278 = vlaneseq
    %v279 = vshrl.u32 %v278, 7
    %v280 = vsub.s32 2, %v279
    %v281 = vrot.slane %v268, %v280
    %v282 = vlaneseq
    %v283 = vshrl.u32 %v282, 7
    %v284 = vsub.s32 3, %v283
    %v285 = vrot.slane %v268, %v284
    %v322 = vunpack.c.l.b16 %v236
    %v323 = vunpack.c.h.b16 %v236
    %v324 = vunpack.c.l.b16 %v237
    %v325 = vunpack.c.h.b16 %v237
    %v326 = vunpack.c.l.b16 %v238
    %v327 = vunpack.c.h.b16 %v238
    %v328 = vunpack.c.l.b16 %v239
    %v329 = vunpack.c.h.b16 %v239
    %v330 = vunpack.c.l.b16 %v240
    %v331 = vunpack.c.h.b16 %v240
    %v332 = vunpack.c.l.b16 %v241
    %v333 = vunpack.c.h.b16 %v241
    %v334 = vunpack.c.l.b16 %v242
    %v335 = vunpack.c.h.b16 %v242
    %v336 = vunpack.c.l.b16 %v243
    %v337 = vunpack.c.h.b16 %v243
    %v338 = vunpack.c.l.b16 %v244
    %v339 = vunpack.c.h.b16 %v244
    %v340 = vunpack.c.l.b16 %v245
    %v341 = vunpack.c.h.b16 %v245
    %v342 = vunpack.c.l.b16 %v246
    %v343 = vunpack.c.h.b16 %v246
    %v344 = vunpack.c.l.b16 %v247
    %v345 = vunpack.c.h.b16 %v247
    %v346 = vunpack.c.l.b16 %v248
    %v347 = vunpack.c.h.b16 %v248
    %v348 = vunpack.c.l.b16 %v249
    %v349 = vunpack.c.h.b16 %v249
    %v350 = vunpack.c.l.b16 %v250
    %v351 = vunpack.c.h.b16 %v250
    %v352 = vunpack.c.l.b16 %v251
    %v353 = vunpack.c.h.b16 %v251
    %v354 = vunpack.c.l.b16 %v252
    %v355 = vunpack.c.h.b16 %v252
    %v356 = vunpack.c.l.b16 %v253
    %v357 = vunpack.c.h.b16 %v253
    %v358 = vunpack.c.l.b16 %v254
    %v359 = vunpack.c.h.b16 %v254
    %v360 = vunpack.c.l.b16 %v255
    %v361 = vunpack.c.h.b16 %v255
    %v362 = vunpack.c.l.b16 %v256
    %v363 = vunpack.c.h.b16 %v256
    %v364 = vunpack.c.l.b16 %v257
    %v365 = vunpack.c.h.b16 %v257
    %v366 = vunpack.c.l.b16 %v258
    %v367 = vunpack.c.h.b16 %v258
    %v368 = vunpack.c.l.b16 %v259
    %v369 = vunpack.c.h.b16 %v259
    %v370 = vunpack.c.l.b16 %v260
    %v371 = vunpack.c.h.b16 %v260
    %v372 = vunpack.c.l.b16 %v261
    %v373 = vunpack.c.h.b16 %v261
    %v374 = vunpack.c.l.b16 %v262
    %v375 = vunpack.c.h.b16 %v262
    %v376 = vunpack.c.l.b16 %v263
    %v377 = vunpack.c.h.b16 %v263
    %v378 = vunpack.c.l.b16 %v264
    %v379 = vunpack.c.h.b16 %v264
    %v380 = vunpack.c.l.b16 %v265
    %v381 = vunpack.c.h.b16 %v265
    %v382 = vunpack.c.l.b16 %v266
    %v383 = vunpack.c.h.b16 %v266
    %v384 = vunpack.c.l.b16 %v267
    %v385 = vunpack.c.h.b16 %v267
    %v386 = vpack.c.b16 %v326, %v322
    %v387 = vpack.c.b16 %v327, %v323
    %v388 = vpack.c.b16 %v328, %v324
    %v389 = vpack.c.b16 %v329, %v325
    %v390 = vpack.c.b16 %v334, %v330
    %v391 = vpack.c.b16 %v335, %v331
    %v392 = vpack.c.b16 %v336, %v332
    %v393 = vpack.c.b16 %v337, %v333
    %v394 = vpack.c.b16 %v342, %v338
    %v395 = vpack.c.b16 %v343, %v339
    %v396 = vpack.c.b16 %v344, %v340
    %v397 = vpack.c.b16 %v345, %v341
    %v398 = vpack.c.b16 %v350, %v346
    %v399 = vpack.c.b16 %v351, %v347
    %v400 = vpack.c.b16 %v352, %v348
    %v401 = vpack.c.b16 %v353, %v349
    %v402 = vpack.c.b16 %v358, %v354
    %v403 = vpack.c.b16 %v359, %v355
    %v404 = vpack.c.b16 %v360, %v356
    %v405 = vpack.c.b16 %v361, %v357
    %v406 = vpack.c.b16 %v366, %v362
    %v407 = vpack.c.b16 %v367, %v363
    %v408 = vpack.c.b16 %v368, %v364
    %v409 = vpack.c.b16 %v369, %v365
    %v410 = vpack.c.b16 %v374, %v370
    %v411 = vpack.c.b16 %v375, %v371
    %v412 = vpack.c.b16 %v376, %v372
    %v413 = vpack.c.b16 %v377, %v373
    %v414 = vpack.c.b16 %v382, %v378
    %v415 = vpack.c.b16 %v383, %v379
    %v416 = vpack.c.b16 %v384, %v380
    %v417 = vpack.c.b16 %v385, %v381
    %450 = vmatprep.subr.bf16.mxu0 %v387
    %451 = vmatpush1.bf16.msra.mxu0 %v386
    %452 = vmatprep.subr.bf16.mxu0 %v391
    %453 = vmatpush1.bf16.msra.mxu0 %v390
    %454 = vmatprep.subr.bf16.mxu0 %v395
    %455 = vmatpush1.bf16.msra.mxu0 %v394
    %456 = vmatprep.subr.bf16.mxu0 %v399
    %457 = vmatpush1.bf16.msra.mxu0 %v398
    %458 = vmatprep.subr.bf16.mxu0 %v403
    %459 = vmatpush1.bf16.msra.mxu0 %v402
    %460 = vmatprep.subr.bf16.mxu0 %v407
    %461 = vmatpush1.bf16.msra.mxu0 %v406
    %462 = vmatprep.subr.bf16.mxu0 %v411
    %463 = vmatpush1.bf16.msra.mxu0 %v410
    %464 = vmatprep.subr.bf16.mxu0 %v415
    %465 = vmatpush1.bf16.msra.mxu0 %v414
    %466 = vmatprep.subr.bf16.mxu0 0
    %467 = vmatpush1.bf16.msra.mxu0 0
    %468 = vmatprep.subr.bf16.mxu0 0
    %469 = vmatpush1.bf16.msra.mxu0 0
    %470 = vmatprep.subr.bf16.mxu0 0
    %471 = vmatpush1.bf16.msra.mxu0 0
    %472 = vmatprep.subr.bf16.mxu0 0
    %473 = vmatpush1.bf16.msra.mxu0 0
    %474 = vmatprep.subr.bf16.mxu0 0
    %475 = vmatpush1.bf16.msra.mxu0 0
    %476 = vmatprep.subr.bf16.mxu0 0
    %477 = vmatpush1.bf16.msra.mxu0 0
    %478 = vmatprep.subr.bf16.mxu0 0
    %479 = vmatpush1.bf16.msra.mxu0 0
    %480 = vmatprep.subr.bf16.mxu0 0
    %481 = vmatpush1.bf16.msra.mxu0 0
    %482 = vmatprep.mubr.bf16.mxu0 0
    %483 = vmatmul.mubr.bf16.gmra.mrb[0].mxu0 %v235
    %v484 = vpop.f32.mrb[0].mxu0
    %v485 = vadd.f32 %v273, %v484
    %v486 = vpop.f32.mrb[0].mxu0
    %v487 = vadd.f32 %v277, %v486
    %v488 = vpop.f32.mrb[0].mxu0
    %v489 = vpop.f32.mrb[0].mxu0
    %490 = vdwg.mxu0
    %491 = vmatprep.subr.bf16.mxu0 %v389
    %492 = vmatpush1.bf16.msra.mxu0 %v388
    %493 = vmatprep.subr.bf16.mxu0 %v393
    %494 = vmatpush1.bf16.msra.mxu0 %v392
    %495 = vmatprep.subr.bf16.mxu0 %v397
    %496 = vmatpush1.bf16.msra.mxu0 %v396
    %497 = vmatprep.subr.bf16.mxu0 %v401
    %498 = vmatpush1.bf16.msra.mxu0 %v400
    %499 = vmatprep.subr.bf16.mxu0 %v405
    %500 = vmatpush1.bf16.msra.mxu0 %v404
    %501 = vmatprep.subr.bf16.mxu0 %v409
    %502 = vmatpush1.bf16.msra.mxu0 %v408
    %503 = vmatprep.subr.bf16.mxu0 %v413
    %504 = vmatpush1.bf16.msra.mxu0 %v412
    %505 = vmatprep.subr.bf16.mxu0 %v417
    %506 = vmatpush1.bf16.msra.mxu0 %v416
    %507 = vmatprep.subr.bf16.mxu0 0
    %508 = vmatpush1.bf16.msra.mxu0 0
    %509 = vmatprep.subr.bf16.mxu0 0
    %510 = vmatpush1.bf16.msra.mxu0 0
    %511 = vmatprep.subr.bf16.mxu0 0
    %512 = vmatpush1.bf16.msra.mxu0 0
    %513 = vmatprep.subr.bf16.mxu0 0
    %514 = vmatpush1.bf16.msra.mxu0 0
    %515 = vmatprep.subr.bf16.mxu0 0
    %516 = vmatpush1.bf16.msra.mxu0 0
    %517 = vmatprep.subr.bf16.mxu0 0
    %518 = vmatpush1.bf16.msra.mxu0 0
    %519 = vmatprep.subr.bf16.mxu0 0
    %520 = vmatpush1.bf16.msra.mxu0 0
    %521 = vmatprep.subr.bf16.mxu0 0
    %522 = vmatpush1.bf16.msra.mxu0 0
    %523 = vmatprep.mubr.bf16.mxu0 0
    %524 = vmatmul.mubr.bf16.gmra.mrb[0].mxu0 %v235
    %v525 = vpop.f32.mrb[0].mxu0
    %v526 = vadd.f32 %v281, %v525
    %v527 = vpop.f32.mrb[0].mxu0
    %v528 = vadd.f32 %v285, %v527
    %v529 = vpop.f32.mrb[0].mxu0
    %v530 = vpop.f32.mrb[0].mxu0
    %531 = vdwg.mxu0
    %v532 = vld [vmem:[%s7] sm:$0xf]
    %v533 = vld [vmem:[%s8] sm:$0xf]
    %v534 = vadd.f32 %v485, %v487
    %v535 = vadd.f32 %v534, %v526
    %v536 = vadd.f32 %v535, %v528
    %537 = vadd.xlane.f32.xlu0 %v536
    %v538 = vpop.xlane.xlu0 %537
    %v539 = vmul.f32 %v538, 0.001953125
    %v540 = vsub.f32 %v485, %v539
    %v541 = vsub.f32 %v487, %v539
    %v542 = vsub.f32 %v526, %v539
    %v543 = vsub.f32 %v528, %v539
    %v544 = vmul.f32 %v540, %v540
    %v545 = vmul.f32 %v541, %v541
    %v546 = vmul.f32 %v542, %v542
    %v547 = vmul.f32 %v543, %v543
    %v548 = vadd.f32 %v544, %v545
    %v549 = vadd.f32 %v548, %v546
    %v550 = vadd.f32 %v549, %v547
    %551 = vadd.xlane.f32.xlu0 %v550
    %v552 = vpop.xlane.xlu0 %551
    %v553 = vmul.f32 %v552, 0.001953125
    %v554 = vadd.f32 %v553, 1e-05
    %v555 = vrsqrt.pop %v554
    %v556 = vmul.f32 %v540, %v555
    %v557 = vmul.f32 %v541, %v555
    %v558 = vmul.f32 %v542, %v555
    %v559 = vmul.f32 %v543, %v555
    %v561 = vlaneseq
    %v562 = vshrl.u32 %v561, 7
    %v563 = vsub.s32 0, %v562
    %v564 = vrot.slane %v532, %v563
    %v565 = vlaneseq
    %v566 = vshrl.u32 %v565, 7
    %v567 = vsub.s32 1, %v566
    %v568 = vrot.slane %v532, %v567
    %v569 = vlaneseq
    %v570 = vshrl.u32 %v569, 7
    %v571 = vsub.s32 2, %v570
    %v572 = vrot.slane %v532, %v571
    %v573 = vlaneseq
    %v574 = vshrl.u32 %v573, 7
    %v575 = vsub.s32 3, %v574
    %v576 = vrot.slane %v532, %v575
    %v581 = vmul.f32 %v556, %v564
    %v582 = vmul.f32 %v557, %v568
    %v583 = vmul.f32 %v558, %v572
    %v584 = vmul.f32 %v559, %v576
    %v586 = vlaneseq
    %v587 = vshrl.u32 %v586, 7
    %v588 = vsub.s32 0, %v587
    %v589 = vrot.slane %v533, %v588
    %v590 = vlaneseq
    %v591 = vshrl.u32 %v590, 7
    %v592 = vsub.s32 1, %v591
    %v593 = vrot.slane %v533, %v592
    %v594 = vlaneseq
    %v595 = vshrl.u32 %v594, 7
    %v596 = vsub.s32 2, %v595
    %v597 = vrot.slane %v533, %v596
    %v598 = vlaneseq
    %v599 = vshrl.u32 %v598, 7
    %v600 = vsub.s32 3, %v599
    %v601 = vrot.slane %v533, %v600
    %v606 = vadd.f32 %v581, %v589
    %v607 = vadd.f32 %v582, %v593
    %v608 = vadd.f32 %v583, %v597
    %v609 = vadd.f32 %v584, %v601
    %v610 = vmax.f32 %v606, 0.0
    %v611 = vmax.f32 %v607, 0.0
    %v612 = vmax.f32 %v608, 0.0
    %v613 = vmax.f32 %v609, 0.0
    %v614 = vld [vmem:[%s9] sm:$0xf]
    %v615 = vld [vmem:[%s10] sm:$0xf]
    %v616 = vadd.f32 %v610, %v611
    %v617 = vadd.f32 %v616, %v612
    %v618 = vadd.f32 %v617, %v613
    %619 = vadd.xlane.f32.xlu0 %v618
    %v620 = vpop.xlane.xlu0 %619
    %v621 = vmul.f32 %v620, 0.001953125
    %v622 = vsub.f32 %v610, %v621
    %v623 = vsub.f32 %v611, %v621
    %v624 = vsub.f32 %v612, %v621
    %v625 = vsub.f32 %v613, %v621
    %v626 = vmul.f32 %v622, %v622
    %v627 = vmul.f32 %v623, %v623
    %v628 = vmul.f32 %v624, %v624
    %v629 = vmul.f32 %v625, %v625
    %v630 = vadd.f32 %v626, %v627
    %v631 = vadd.f32 %v630, %v628
    %v632 = vadd.f32 %v631, %v629
    %633 = vadd.xlane.f32.xlu0 %v632
    %v634 = vpop.xlane.xlu0 %633
    %v635 = vmul.f32 %v634, 0.001953125
    %v636 = vadd.f32 %v635, 1e-05
    %v637 = vrsqrt.pop %v636
    %v638 = vmul.f32 %v622, %v637
    %v639 = vmul.f32 %v623, %v637
    %v640 = vmul.f32 %v624, %v637
    %v641 = vmul.f32 %v625, %v637
    %v643 = vlaneseq
    %v644 = vshrl.u32 %v643, 7
    %v645 = vsub.s32 0, %v644
    %v646 = vrot.slane %v614, %v645
    %v647 = vlaneseq
    %v648 = vshrl.u32 %v647, 7
    %v649 = vsub.s32 1, %v648
    %v650 = vrot.slane %v614, %v649
    %v651 = vlaneseq
    %v652 = vshrl.u32 %v651, 7
    %v653 = vsub.s32 2, %v652
    %v654 = vrot.slane %v614, %v653
    %v655 = vlaneseq
    %v656 = vshrl.u32 %v655, 7
    %v657 = vsub.s32 3, %v656
    %v658 = vrot.slane %v614, %v657
    %v663 = vmul.f32 %v638, %v646
    %v664 = vmul.f32 %v639, %v650
    %v665 = vmul.f32 %v640, %v654
    %v666 = vmul.f32 %v641, %v658
    %v668 = vlaneseq
    %v669 = vshrl.u32 %v668, 7
    %v670 = vsub.s32 0, %v669
    %v671 = vrot.slane %v615, %v670
    %v672 = vlaneseq
    %v673 = vshrl.u32 %v672, 7
    %v674 = vsub.s32 1, %v673
    %v675 = vrot.slane %v615, %v674
    %v676 = vlaneseq
    %v677 = vshrl.u32 %v676, 7
    %v678 = vsub.s32 2, %v677
    %v679 = vrot.slane %v615, %v678
    %v680 = vlaneseq
    %v681 = vshrl.u32 %v680, 7
    %v682 = vsub.s32 3, %v681
    %v683 = vrot.slane %v615, %v682
    %v688 = vadd.f32 %v663, %v671
    %v689 = vadd.f32 %v664, %v675
    %v690 = vadd.f32 %v665, %v679
    %v691 = vadd.f32 %v666, %v683
    %692 = vst [vmem:[#allocation10] sm:$0xff] %v688
    %693 = vst [vmem:[#allocation10 + $0x8] sm:$0xff] %v689
    %694 = vst [vmem:[#allocation10 + $0x10] sm:$0xff] %v690
    %695 = vst [vmem:[#allocation10 + $0x18] sm:$0xff] %v691
    // Predicated region
    $region62: #{tpu_custom_call.1} parent=1 // pred_check
      _
    $region63: #{tpu_custom_call.1} parent=1 // pred_check_branch
      %697 = sbr.rel (0) target = $region65
    $region64: #{tpu_custom_call.1} parent=1 // pred_region
      %s699 = ssub.s32 512, 512
      %700 = vsyncadd [#allocation4], %s699
      %s702 = sshll.u32 [#allocation10], 4
      %s703 = int_to_ptr.vmem [resolvable:$true] %s702
      %705 = dma.vmem_to_hbm [thread:$0]  %s703, 512, %s11, [#allocation4]
    $region65: #{tpu_custom_call.1} parent=1 // pred_fallthru
      _
    // Predicated region
    $region66: #{tpu_custom_call.1} parent=1 // pred_check
      _
    $region67: #{tpu_custom_call.1} parent=1 // pred_check_branch
      %707 = sbr.rel (0) target = $region69
    $region68: #{tpu_custom_call.1} parent=1 // pred_region
      %708 = dma.done [#allocation4], 512
    $region69: #{tpu_custom_call.1} parent=1 // pred_fallthru
      _
    %709 = vsyncpa [#allocation3], 1
    %710 = vsyncpa [#allocation6], 1
    %711 = vsyncpa [#allocation9], 1
    %712 = vsyncpa [#allocation4], 1

</llo_original>
